<compile_context>
chip_gen: v6e
topology: v6e:2x2x1
jax: 0.10.0
libtpu: 0.0.40
codegen_flags: <defaults>
</compile_context>

<pallas_src>
import functools

import jax
import jax.numpy as jnp
from jax.experimental import pallas as pl
from jax.experimental.pallas import tpu as pltpu


def _round_up(x, m):
    return ((x + m - 1) // m) * m


def _decoder_kernel(z_ref, w1_ref, b1_ref, w2_ref, b2_ref, o_ref):
    # Cast z to bf16 in-kernel (free on the VPU in an HBM-bound kernel).
    z = z_ref[...].astype(jnp.bfloat16)
    # Linear(latent_dim -> hidden) + ReLU, f32 accumulation / f32 epilogue.
    h = jnp.dot(z, w1_ref[...], preferred_element_type=jnp.float32)
    h = jnp.maximum(h + b1_ref[...], 0.0)             # b1 is (1, hidden) f32
    # Linear(hidden -> msg_length_padded) + Sigmoid.
    y = jnp.dot(h.astype(jnp.bfloat16), w2_ref[...],
                preferred_element_type=jnp.float32)
    y = y + b2_ref[...]                                # b2 is (1, n_pad) f32
    o_ref[...] = jax.nn.sigmoid(y).astype(o_ref.dtype)  # bf16 store


def prepare_params(w1, b1, w2, b2):
    """One-time param prep: pad msg columns to a 128-lane multiple and cast
    weights to bf16 (biases stay f32). Returns (params, msg_length)."""
    msg_length = w2.shape[1]
    n_pad = max(128, _round_up(msg_length, 128))
    if n_pad != msg_length:
        w2 = jnp.pad(w2, ((0, 0), (0, n_pad - msg_length)))
        b2 = jnp.pad(b2, ((0, 0), (0, n_pad - msg_length)))
    params = (w1.astype(jnp.bfloat16), b1.astype(jnp.float32),
              w2.astype(jnp.bfloat16), b2.astype(jnp.float32))
    return params, msg_length


@functools.partial(jax.jit, static_argnames=("msg_length", "block_b"))
def watermark_decoder(z, w1, b1, w2, b2, *, msg_length, block_b=512):
    """sigmoid(relu(z @ w1 + b1) @ w2 + b2) — WatermarkDecoder forward.

    z: (B, latent_dim) f32/bf16; w1: (latent_dim, hidden) bf16;
    b1: (1, hidden) f32; w2: (hidden, n_pad) bf16; b2: (1, n_pad) f32
    (already prepared via prepare_params). Returns (B, msg_length) f32.
    """
    B, latent_dim = z.shape
    hidden = w1.shape[1]
    n_pad = w2.shape[1]

    # Batch tile: big MXU/DMA-friendly tiles, auto-shrunk for tiny B, and
    # capped at ceil(B/2) so large B always produces >=2 parallel grid steps
    # (keeps both v7x TensorCores busy). Partial edge block is masked by
    # Pallas — no batch zero-padding pass over z.
    eff_block = max(8, min(_round_up(block_b, 8),
                           _round_up(pl.cdiv(B, 2), 8)))
    grid = (pl.cdiv(B, eff_block),)

    cost = pl.CostEstimate(
        flops=2 * B * (latent_dim * hidden + hidden * n_pad),
        transcendentals=B * n_pad,
        bytes_accessed=(B * latent_dim * z.dtype.itemsize   # z (native dtype)
                        + latent_dim * hidden * 2           # w1 (bf16)
                        + hidden * n_pad * 2                # w2 (bf16)
                        + (hidden + n_pad) * 4              # biases (f32)
                        + B * n_pad * 2),                   # out (bf16)
    )

    out = pl.pallas_call(
        _decoder_kernel,
        out_shape=jax.ShapeDtypeStruct((B, n_pad), jnp.bfloat16),
        grid_spec=pltpu.PrefetchScalarGridSpec(
            num_scalar_prefetch=0,
            grid=grid,
            in_specs=[
                pl.BlockSpec((eff_block, latent_dim), lambda i: (i, 0)),  # z tile
                pl.BlockSpec((latent_dim, hidden), lambda i: (0, 0)),     # W1 (resident)
                pl.BlockSpec((1, hidden), lambda i: (0, 0)),              # b1
                pl.BlockSpec((hidden, n_pad), lambda i: (0, 0)),          # W2 (resident)
                pl.BlockSpec((1, n_pad), lambda i: (0, 0)),               # b2
            ],
            out_specs=pl.BlockSpec((eff_block, n_pad), lambda i: (i, 0)),
        ),
        compiler_params=pltpu.CompilerParams(
            dimension_semantics=("parallel",),        # shard batch tiles on v7x
            vmem_limit_bytes=32 * 1024 * 1024,        # working set is only a few MiB
        ),
        cost_estimate=cost,
    )(z, w1, b1, w2, b2)

    # Strip the zero-padded (sigmoid -> 0.5) output columns; upcast to f32.
    return out[:, :msg_length].astype(jnp.float32)


def init_params(key, latent_dim=256, hidden=128, msg_length=64):
    """Deterministic synthetic params, PyTorch-Linear-like uniform init,
    stored already transposed to [in, out] for the kernel (f32 master copy)."""
    k1, k2, k3, k4 = jax.random.split(key, 4)
    lim1 = 1.0 / (latent_dim ** 0.5)
    lim2 = 1.0 / (hidden ** 0.5)
    w1 = jax.random.uniform(k1, (latent_dim, hidden), jnp.float32, -lim1, lim1)
    b1 = jax.random.uniform(k2, (1, hidden), jnp.float32, -lim1, lim1)
    w2 = jax.random.uniform(k3, (hidden, msg_length), jnp.float32, -lim2, lim2)
    b2 = jax.random.uniform(k4, (1, msg_length), jnp.float32, -lim2, lim2)
    return w1, b1, w2, b2


if __name__ == "__main__":
    latent_dim, hidden, msg_length = 256, 128, 64

    key = jax.random.PRNGKey(0)
    kz, kz2, kp = jax.random.split(key, 3)

    # Master f32 params (for the reference) + one-time prepared kernel params.
    w1, b1, w2, b2 = init_params(kp, latent_dim, hidden, msg_length)
    (pw1, pb1, pw2, pb2), msg_len = prepare_params(w1, b1, w2, b2)

    def ref_fwd(z):
        return jax.nn.sigmoid(jnp.maximum(z @ w1 + b1, 0.0) @ w2 + b2)

    # Case 1: small batch (tile auto-shrinks to 8, single grid step).
    z = jax.random.normal(kz, (8, latent_dim), jnp.float32)
    out = jax.block_until_ready(
        watermark_decoder(z, pw1, pb1, pw2, pb2, msg_length=msg_len))
    assert out.shape == (8, msg_length)
    assert jnp.allclose(out, ref_fwd(z), atol=2e-2, rtol=2e-2), (
        float(jnp.max(jnp.abs(out - ref_fwd(z)))))

    # Case 2: batch not a multiple of the tile -> exercises the masked edge
    # block (no zero-padding of z in the wrapper).
    z2 = jax.random.normal(kz2, (13, latent_dim), jnp.float32)
    out2 = jax.block_until_ready(
        watermark_decoder(z2, pw1, pb1, pw2, pb2, msg_length=msg_len))
    assert out2.shape == (13, msg_length)
    assert jnp.allclose(out2, ref_fwd(z2), atol=2e-2, rtol=2e-2), (
        float(jnp.max(jnp.abs(out2 - ref_fwd(z2)))))

    print("KERNEL_OK")
</pallas_src>

<mosaic_0001>
module attributes {stable_mosaic.version = 11 : i64} {
  func.func @_decoder_kernel(%arg0: i32, %arg1: memref<8x256xf32, #tpu.memory_space<vmem>>, %arg2: memref<256x128xbf16, #tpu.memory_space<vmem>>, %arg3: memref<1x128xf32, #tpu.memory_space<vmem>>, %arg4: memref<128x128xbf16, #tpu.memory_space<vmem>>, %arg5: memref<1x128xf32, #tpu.memory_space<vmem>>, %arg6: memref<8x128xbf16, #tpu.memory_space<vmem>>) attributes {dimension_semantics = [#tpu.dimension_semantics<parallel>], iteration_bounds = array<i64: 1>, scalar_prefetch = 0 : i64, scratch_operands = 0 : i64, tpu.core_type = #tpu.core_type<tc>, window_params = [{transform_indices = @transform_0, window_bounds = array<i64: 8, 256>}, {pipeline_mode = #tpu.pipeline_mode<synchronous>, transform_indices = @transform_1, window_bounds = array<i64: 256, 128>}, {pipeline_mode = #tpu.pipeline_mode<synchronous>, transform_indices = @transform_2, window_bounds = array<i64: 1, 128>}, {pipeline_mode = #tpu.pipeline_mode<synchronous>, transform_indices = @transform_3, window_bounds = array<i64: 128, 128>}, {pipeline_mode = #tpu.pipeline_mode<synchronous>, transform_indices = @transform_4, window_bounds = array<i64: 1, 128>}, {transform_indices = @transform_5, window_bounds = array<i64: 8, 128>}]} {
    %c0 = arith.constant 0 : index
    %c0_0 = arith.constant 0 : index
    %0 = vector.load %arg1[%c0, %c0_0] : memref<8x256xf32, #tpu.memory_space<vmem>>, vector<8x256xf32>
    %1 = arith.truncf %0 : vector<8x256xf32> to vector<8x256xbf16>
    %c0_1 = arith.constant 0 : index
    %c0_2 = arith.constant 0 : index
    %2 = vector.load %arg2[%c0_1, %c0_2] : memref<256x128xbf16, #tpu.memory_space<vmem>>, vector<256x128xbf16>
    %cst = arith.constant dense<0.000000e+00> : vector<8x128xf32>
    %3 = tpu.matmul %1, %2, %cst {dimension_numbers = #tpu.dot_dimension_numbers<[1], [0], [0], [1], [0, 0, 1, 1], [], []>} : vector<8x256xbf16>, vector<256x128xbf16>, vector<8x128xf32> -> vector<8x128xf32>
    %c0_3 = arith.constant 0 : index
    %c0_4 = arith.constant 0 : index
    %4 = vector.load %arg3[%c0_3, %c0_4] : memref<1x128xf32, #tpu.memory_space<vmem>>, vector<1x128xf32>
    %5 = vector.broadcast %4 : vector<1x128xf32> to vector<8x128xf32>
    %6 = arith.addf %3, %5 : vector<8x128xf32>
    %cst_5 = arith.constant 0.000000e+00 : f32
    %7 = vector.broadcast %cst_5 : f32 to vector<8x128xf32>
    %8 = arith.maximumf %6, %7 : vector<8x128xf32>
    %9 = arith.truncf %8 : vector<8x128xf32> to vector<8x128xbf16>
    %c0_6 = arith.constant 0 : index
    %c0_7 = arith.constant 0 : index
    %10 = vector.load %arg4[%c0_6, %c0_7] : memref<128x128xbf16, #tpu.memory_space<vmem>>, vector<128x128xbf16>
    %cst_8 = arith.constant dense<0.000000e+00> : vector<8x128xf32>
    %11 = tpu.matmul %9, %10, %cst_8 {dimension_numbers = #tpu.dot_dimension_numbers<[1], [0], [0], [1], [0, 0, 1, 1], [], []>} : vector<8x128xbf16>, vector<128x128xbf16>, vector<8x128xf32> -> vector<8x128xf32>
    %c0_9 = arith.constant 0 : index
    %c0_10 = arith.constant 0 : index
    %12 = vector.load %arg5[%c0_9, %c0_10] : memref<1x128xf32, #tpu.memory_space<vmem>>, vector<1x128xf32>
    %13 = vector.broadcast %12 : vector<1x128xf32> to vector<8x128xf32>
    %14 = arith.addf %11, %13 : vector<8x128xf32>
    %15 = arith.negf %14 : vector<8x128xf32>
    %16 = math.exp %15 : vector<8x128xf32>
    %cst_11 = arith.constant 1.000000e+00 : f32
    %17 = vector.broadcast %cst_11 : f32 to vector<8x128xf32>
    %18 = arith.addf %17, %16 : vector<8x128xf32>
    %19 = arith.divf %17, %18 : vector<8x128xf32>
    %20 = arith.truncf %19 : vector<8x128xf32> to vector<8x128xbf16>
    %c0_12 = arith.constant 0 : index
    %c0_13 = arith.constant 0 : index
    %21 = vector.load %arg6[%c0_12, %c0_13] : memref<8x128xbf16, #tpu.memory_space<vmem>>, vector<8x128xbf16>
    tpu.vector_store %arg6[%c0_12, %c0_13], %20 {strides = array<i32>} : memref<8x128xbf16, #tpu.memory_space<vmem>>, vector<8x128xbf16>,
    return
  }
  func.func @transform_0(%arg0: i32) -> (i32, i32) {
    %c0_i32 = arith.constant 0 : i32
    %c0_i32_0 = arith.constant 0 : i32
    return %arg0, %c0_i32 : i32, i32
  }
  func.func @transform_1(%arg0: i32) -> (i32, i32) {
    %c0_i32 = arith.constant 0 : i32
    %c0_i32_0 = arith.constant 0 : i32
    %c0_i32_1 = arith.constant 0 : i32
    return %c0_i32, %c0_i32_0 : i32, i32
  }
  func.func @transform_2(%arg0: i32) -> (i32, i32) {
    %c0_i32 = arith.constant 0 : i32
    %c0_i32_0 = arith.constant 0 : i32
    %c0_i32_1 = arith.constant 0 : i32
    return %c0_i32, %c0_i32_0 : i32, i32
  }
  func.func @transform_3(%arg0: i32) -> (i32, i32) {
    %c0_i32 = arith.constant 0 : i32
    %c0_i32_0 = arith.constant 0 : i32
    %c0_i32_1 = arith.constant 0 : i32
    return %c0_i32, %c0_i32_0 : i32, i32
  }
  func.func @transform_4(%arg0: i32) -> (i32, i32) {
    %c0_i32 = arith.constant 0 : i32
    %c0_i32_0 = arith.constant 0 : i32
    %c0_i32_1 = arith.constant 0 : i32
    return %c0_i32, %c0_i32_0 : i32, i32
  }
  func.func @transform_5(%arg0: i32) -> (i32, i32) {
    %c0_i32 = arith.constant 0 : i32
    %c0_i32_0 = arith.constant 0 : i32
    return %arg0, %c0_i32 : i32, i32
  }
}

</mosaic_0001>

<llo_original>
// kernel: watermark_decoder.1
$region0: #{watermark_decoder.1}
  #allocation0 [shape = 'u32[]', space=smem, size = 0x4, offset = 0x4, fixed_abs, tag = 'smem constant byte address 0x4 - core index']
  #allocation1 [shape = 'u32[144,128]{1,0:T(1,128)}', space=vmem, size = 0x12000, scoped, tag = 'internal scratch']
  %s0 = inlined_call_operand.hbm [shape: f32[8,256], index: 0, kind: input, shape index: {}]
  %s1 = inlined_call_operand.hbm [shape: bf16[256,128], index: 1, kind: input, shape index: {}]
  %s2 = inlined_call_operand.vmem [shape: f32[1,128], index: 2, kind: input, shape index: {}]
  %s3 = inlined_call_operand.hbm [shape: bf16[128,128], index: 3, kind: input, shape index: {}]
  %s4 = inlined_call_operand.vmem [shape: f32[1,128], index: 4, kind: input, shape index: {}]
  %s5 = inlined_call_operand.vmem [shape: bf16[8,128], index: 5, kind: output, shape index: {}]
  %s6 = sld [smem:[#allocation0]]
  $region42: #{watermark_decoder.1} parent=0
    _
  %s8 = ssub.s32 1, %s6
  %s9 = scalar_select 0, %s8, %s6
  $region1: #{watermark_decoder.1} parent=0
    #allocation2 [shape = 'u8[8192]{0}', space=vmem, size = 0x2000, scoped, tag = 'input window, operand 0, single buffered']
    #allocation3 [shape = 's32[1]{0}', space=sflag, size = 0x4, scoped, tag = 'scoped memory for watermark_decoder.1']
    #allocation4 [shape = 'u8[65536]{0}', space=vmem, size = 0x10000, scoped, tag = 'input window, operand 1, single buffered']
    #allocation5 [shape = 's32[1]{0}', space=sflag, size = 0x4, scoped, tag = 'scoped memory for watermark_decoder.1']
    #allocation6 [shape = 'u8[32768]{0}', space=vmem, size = 0x8000, scoped, tag = 'input window, operand 3, single buffered']
    %10 = vsyncpa [#allocation3], 0
    %11 = vsyncpa [#allocation5], 0
    // Predicated region
    $region2: #{watermark_decoder.1} parent=1 // pred_check
      _
    $region3: #{watermark_decoder.1} parent=1 // pred_check_branch
      %13 = sbr.rel (0) target = $region5
    $region4: #{watermark_decoder.1} parent=1 // pred_region
      %s15 = ssub.s32 256, 256
      %16 = vsyncadd [#allocation3], %s15
      %s18 = sshll.u32 [#allocation2], 4
      %s19 = int_to_ptr.vmem [resolvable:$true] %s18
      %21 = dma.hbm_to_vmem [thread:$0]  %s0, 256, %s19, [#allocation3]
    $region5: #{watermark_decoder.1} parent=1 // pred_fallthru
      _
    // Predicated region
    $region6: #{watermark_decoder.1} parent=1 // pred_check
      _
    $region7: #{watermark_decoder.1} parent=1 // pred_check_branch
      %23 = sbr.rel (0) target = $region9
    $region8: #{watermark_decoder.1} parent=1 // pred_region
      %s25 = ssub.s32 2048, 2048
      %26 = vsyncadd [#allocation5], %s25
      %s27 = sshll.u32 [#allocation4], 4
      %s28 = int_to_ptr.vmem [resolvable:$true] %s27
      %33 = dma.hbm_to_vmem [thread:$0]  %s1, 2048, %s28, [#allocation5], 64, 64, 4
    $region9: #{watermark_decoder.1} parent=1 // pred_fallthru
      _
    // Predicated region
    $region10: #{watermark_decoder.1} parent=1 // pred_check
      _
    $region11: #{watermark_decoder.1} parent=1 // pred_check_branch
      %35 = sbr.rel (0) target = $region13
    $region12: #{watermark_decoder.1} parent=1 // pred_region
      _
    $region13: #{watermark_decoder.1} parent=1 // pred_fallthru
      _
    // Predicated region
    $region14: #{watermark_decoder.1} parent=1 // pred_check
      _
    $region15: #{watermark_decoder.1} parent=1 // pred_check_branch
      %37 = sbr.rel (0) target = $region17
    $region16: #{watermark_decoder.1} parent=1 // pred_region
      %s39 = ssub.s32 1024, 1024
      %40 = vsyncadd [#allocation5], %s39
      %s41 = sshll.u32 [#allocation6], 4
      %s42 = int_to_ptr.vmem [resolvable:$true] %s41
      %47 = dma.hbm_to_vmem [thread:$0]  %s3, 1024, %s42, [#allocation5], 64, 64, 4
    $region17: #{watermark_decoder.1} parent=1 // pred_fallthru
      _
    // Predicated region
    $region18: #{watermark_decoder.1} parent=1 // pred_check
      _
    $region19: #{watermark_decoder.1} parent=1 // pred_check_branch
      %49 = sbr.rel (0) target = $region21
    $region20: #{watermark_decoder.1} parent=1 // pred_region
      _
    $region21: #{watermark_decoder.1} parent=1 // pred_fallthru
      _
    // Predicated region
    $region22: #{watermark_decoder.1} parent=1 // pred_check
      _
    $region23: #{watermark_decoder.1} parent=1 // pred_check_branch
      %51 = sbr.rel (0) target = $region25
    $region24: #{watermark_decoder.1} parent=1 // pred_region
      %52 = dma.done [#allocation3], 256
    $region25: #{watermark_decoder.1} parent=1 // pred_fallthru
      _
    // Predicated region
    $region26: #{watermark_decoder.1} parent=1 // pred_check
      _
    $region27: #{watermark_decoder.1} parent=1 // pred_check_branch
      %54 = sbr.rel (0) target = $region29
    $region28: #{watermark_decoder.1} parent=1 // pred_region
      %55 = dma.done [#allocation5], 2048
    $region29: #{watermark_decoder.1} parent=1 // pred_fallthru
      _
    // Predicated region
    $region30: #{watermark_decoder.1} parent=1 // pred_check
      _
    $region31: #{watermark_decoder.1} parent=1 // pred_check_branch
      %57 = sbr.rel (0) target = $region33
    $region32: #{watermark_decoder.1} parent=1 // pred_region
      %58 = dma.done [#allocation5], 1024
    $region33: #{watermark_decoder.1} parent=1 // pred_fallthru
      _
    %v60 = vld [vmem:[#allocation2] sm:$0xff]
    %v61 = vld [vmem:[#allocation2 + $0x8] sm:$0xff]
    %v62 = vpack.c.bf16 %v60, %v60
    %v63 = vpack.c.bf16 %v61, %v61
    %v64 = vld [vmem:[#allocation4] sm:$0xf]
    %v65 = vld [vmem:[#allocation4 + $0x4] sm:$0xf]
    %v66 = vld [vmem:[#allocation4 + $0x8] sm:$0xf]
    %v67 = vld [vmem:[#allocation4 + $0xc] sm:$0xf]
    %v68 = vld [vmem:[#allocation4 + $0x10] sm:$0xf]
    %v69 = vld [vmem:[#allocation4 + $0x14] sm:$0xf]
    %v70 = vld [vmem:[#allocation4 + $0x18] sm:$0xf]
    %v71 = vld [vmem:[#allocation4 + $0x1c] sm:$0xf]
    %v72 = vld [vmem:[#allocation4 + $0x20] sm:$0xf]
    %v73 = vld [vmem:[#allocation4 + $0x24] sm:$0xf]
    %v74 = vld [vmem:[#allocation4 + $0x28] sm:$0xf]
    %v75 = vld [vmem:[#allocation4 + $0x2c] sm:$0xf]
    %v76 = vld [vmem:[#allocation4 + $0x30] sm:$0xf]
    %v77 = vld [vmem:[#allocation4 + $0x34] sm:$0xf]
    %v78 = vld [vmem:[#allocation4 + $0x38] sm:$0xf]
    %v79 = vld [vmem:[#allocation4 + $0x3c] sm:$0xf]
    %v80 = vld [vmem:[#allocation4 + $0x40] sm:$0xf]
    %v81 = vld [vmem:[#allocation4 + $0x44] sm:$0xf]
    %v82 = vld [vmem:[#allocation4 + $0x48] sm:$0xf]
    %v83 = vld [vmem:[#allocation4 + $0x4c] sm:$0xf]
    %v84 = vld [vmem:[#allocation4 + $0x50] sm:$0xf]
    %v85 = vld [vmem:[#allocation4 + $0x54] sm:$0xf]
    %v86 = vld [vmem:[#allocation4 + $0x58] sm:$0xf]
    %v87 = vld [vmem:[#allocation4 + $0x5c] sm:$0xf]
    %v88 = vld [vmem:[#allocation4 + $0x60] sm:$0xf]
    %v89 = vld [vmem:[#allocation4 + $0x64] sm:$0xf]
    %v90 = vld [vmem:[#allocation4 + $0x68] sm:$0xf]
    %v91 = vld [vmem:[#allocation4 + $0x6c] sm:$0xf]
    %v92 = vld [vmem:[#allocation4 + $0x70] sm:$0xf]
    %v93 = vld [vmem:[#allocation4 + $0x74] sm:$0xf]
    %v94 = vld [vmem:[#allocation4 + $0x78] sm:$0xf]
    %v95 = vld [vmem:[#allocation4 + $0x7c] sm:$0xf]
    %v96 = vld [vmem:[%s2] sm:$0x1]
    %v98 = vlaneseq
    %v99 = vshrl.u32 %v98, 7
    %v100 = vsub.s32 0, %v99
    %v101 = vrot.slane %v96, %v100
    %v135 = vunpack.c.l.b16 %v64
    %v136 = vunpack.c.l.b16 %v65
    %v137 = vunpack.c.l.b16 %v66
    %v138 = vunpack.c.l.b16 %v67
    %v139 = vunpack.c.l.b16 %v68
    %v140 = vunpack.c.l.b16 %v69
    %v141 = vunpack.c.l.b16 %v70
    %v142 = vunpack.c.l.b16 %v71
    %v143 = vunpack.c.l.b16 %v72
    %v144 = vunpack.c.l.b16 %v73
    %v145 = vunpack.c.l.b16 %v74
    %v146 = vunpack.c.l.b16 %v75
    %v147 = vunpack.c.l.b16 %v76
    %v148 = vunpack.c.l.b16 %v77
    %v149 = vunpack.c.l.b16 %v78
    %v150 = vunpack.c.l.b16 %v79
    %v151 = vunpack.c.l.b16 %v80
    %v152 = vunpack.c.l.b16 %v81
    %v153 = vunpack.c.l.b16 %v82
    %v154 = vunpack.c.l.b16 %v83
    %v155 = vunpack.c.l.b16 %v84
    %v156 = vunpack.c.l.b16 %v85
    %v157 = vunpack.c.l.b16 %v86
    %v158 = vunpack.c.l.b16 %v87
    %v159 = vunpack.c.l.b16 %v88
    %v160 = vunpack.c.l.b16 %v89
    %v161 = vunpack.c.l.b16 %v90
    %v162 = vunpack.c.l.b16 %v91
    %v163 = vunpack.c.l.b16 %v92
    %v164 = vunpack.c.l.b16 %v93
    %v165 = vunpack.c.l.b16 %v94
    %v166 = vunpack.c.l.b16 %v95
    %v167 = vpack.c.b16 %v136, %v135
    %v168 = vpack.c.b16 %v138, %v137
    %v169 = vpack.c.b16 %v140, %v139
    %v170 = vpack.c.b16 %v142, %v141
    %v171 = vpack.c.b16 %v144, %v143
    %v172 = vpack.c.b16 %v146, %v145
    %v173 = vpack.c.b16 %v148, %v147
    %v174 = vpack.c.b16 %v150, %v149
    %v175 = vpack.c.b16 %v152, %v151
    %v176 = vpack.c.b16 %v154, %v153
    %v177 = vpack.c.b16 %v156, %v155
    %v178 = vpack.c.b16 %v158, %v157
    %v179 = vpack.c.b16 %v160, %v159
    %v180 = vpack.c.b16 %v162, %v161
    %v181 = vpack.c.b16 %v164, %v163
    %v182 = vpack.c.b16 %v166, %v165
    %199 = vmatprep.subr.bf16.mxu0 0
    %200 = vmatpush1.bf16.msra.mxu0 %v174
    %201 = vmatprep.subr.bf16.mxu0 0
    %202 = vmatpush1.bf16.msra.mxu0 %v173
    %203 = vmatprep.subr.bf16.mxu0 0
    %204 = vmatpush1.bf16.msra.mxu0 %v172
    %205 = vmatprep.subr.bf16.mxu0 0
    %206 = vmatpush1.bf16.msra.mxu0 %v171
    %207 = vmatprep.subr.bf16.mxu0 0
    %208 = vmatpush1.bf16.msra.mxu0 %v170
    %209 = vmatprep.subr.bf16.mxu0 0
    %210 = vmatpush1.bf16.msra.mxu0 %v169
    %211 = vmatprep.subr.bf16.mxu0 0
    %212 = vmatpush1.bf16.msra.mxu0 %v168
    %213 = vmatprep.subr.bf16.mxu0 0
    %214 = vmatpush1.bf16.msra.mxu0 %v167
    %215 = vmatprep.subr.bf16.mxu0 0
    %216 = vmatpush2.bf16.msra.mxu0 %v182
    %217 = vmatprep.subr.bf16.mxu0 0
    %218 = vmatpush2.bf16.msra.mxu0 %v181
    %219 = vmatprep.subr.bf16.mxu0 0
    %220 = vmatpush2.bf16.msra.mxu0 %v180
    %221 = vmatprep.subr.bf16.mxu0 0
    %222 = vmatpush2.bf16.msra.mxu0 %v179
    %223 = vmatprep.subr.bf16.mxu0 0
    %224 = vmatpush2.bf16.msra.mxu0 %v178
    %225 = vmatprep.subr.bf16.mxu0 0
    %226 = vmatpush2.bf16.msra.mxu0 %v177
    %227 = vmatprep.subr.bf16.mxu0 0
    %228 = vmatpush2.bf16.msra.mxu0 %v176
    %229 = vmatprep.subr.bf16.mxu0 0
    %230 = vmatpush2.bf16.msra.mxu0 %v175
    %231 = vmatprep.mubr.bf16.mxu0 %v63
    %232 = vmatmul.mubr.bf16.gmra.mxu0 %v62
    %v233 = vpop.f32.mrf.mxu0
    %v234 = vadd.f32 %v101, %v233
    %v235 = vpop.f32.mrf.mxu0
    %v236 = vpop.f32.mrf.mxu0
    %v237 = vpop.f32.mrf.mxu0
    %238 = vdwg.mxu0
    %v239 = vmax.f32 %v234, 0.0
    %v240 = vpack.c.bf16 %v239, %v239
    %v241 = vld [vmem:[#allocation6] sm:$0xf]
    %v242 = vld [vmem:[#allocation6 + $0x4] sm:$0xf]
    %v243 = vld [vmem:[#allocation6 + $0x8] sm:$0xf]
    %v244 = vld [vmem:[#allocation6 + $0xc] sm:$0xf]
    %v245 = vld [vmem:[#allocation6 + $0x10] sm:$0xf]
    %v246 = vld [vmem:[#allocation6 + $0x14] sm:$0xf]
    %v247 = vld [vmem:[#allocation6 + $0x18] sm:$0xf]
    %v248 = vld [vmem:[#allocation6 + $0x1c] sm:$0xf]
    %v249 = vld [vmem:[#allocation6 + $0x20] sm:$0xf]
    %v250 = vld [vmem:[#allocation6 + $0x24] sm:$0xf]
    %v251 = vld [vmem:[#allocation6 + $0x28] sm:$0xf]
    %v252 = vld [vmem:[#allocation6 + $0x2c] sm:$0xf]
    %v253 = vld [vmem:[#allocation6 + $0x30] sm:$0xf]
    %v254 = vld [vmem:[#allocation6 + $0x34] sm:$0xf]
    %v255 = vld [vmem:[#allocation6 + $0x38] sm:$0xf]
    %v256 = vld [vmem:[#allocation6 + $0x3c] sm:$0xf]
    %v257 = vld [vmem:[%s4] sm:$0x1]
    %v259 = vlaneseq
    %v260 = vshrl.u32 %v259, 7
    %v261 = vsub.s32 0, %v260
    %v262 = vrot.slane %v257, %v261
    %v280 = vunpack.c.l.b16 %v241
    %v281 = vunpack.c.l.b16 %v242
    %v282 = vunpack.c.l.b16 %v243
    %v283 = vunpack.c.l.b16 %v244
    %v284 = vunpack.c.l.b16 %v245
    %v285 = vunpack.c.l.b16 %v246
    %v286 = vunpack.c.l.b16 %v247
    %v287 = vunpack.c.l.b16 %v248
    %v288 = vunpack.c.l.b16 %v249
    %v289 = vunpack.c.l.b16 %v250
    %v290 = vunpack.c.l.b16 %v251
    %v291 = vunpack.c.l.b16 %v252
    %v292 = vunpack.c.l.b16 %v253
    %v293 = vunpack.c.l.b16 %v254
    %v294 = vunpack.c.l.b16 %v255
    %v295 = vunpack.c.l.b16 %v256
    %v296 = vpack.c.b16 %v281, %v280
    %v297 = vpack.c.b16 %v283, %v282
    %v298 = vpack.c.b16 %v285, %v284
    %v299 = vpack.c.b16 %v287, %v286
    %v300 = vpack.c.b16 %v289, %v288
    %v301 = vpack.c.b16 %v291, %v290
    %v302 = vpack.c.b16 %v293, %v292
    %v303 = vpack.c.b16 %v295, %v294
    %312 = vmatprep.subr.bf16.mxu0 0
    %313 = vmatpush1.bf16.msra.mxu0 %v303
    %314 = vmatprep.subr.bf16.mxu0 0
    %315 = vmatpush1.bf16.msra.mxu0 %v302
    %316 = vmatprep.subr.bf16.mxu0 0
    %317 = vmatpush1.bf16.msra.mxu0 %v301
    %318 = vmatprep.subr.bf16.mxu0 0
    %319 = vmatpush1.bf16.msra.mxu0 %v300
    %320 = vmatprep.subr.bf16.mxu0 0
    %321 = vmatpush1.bf16.msra.mxu0 %v299
    %322 = vmatprep.subr.bf16.mxu0 0
    %323 = vmatpush1.bf16.msra.mxu0 %v298
    %324 = vmatprep.subr.bf16.mxu0 0
    %325 = vmatpush1.bf16.msra.mxu0 %v297
    %326 = vmatprep.subr.bf16.mxu0 0
    %327 = vmatpush1.bf16.msra.mxu0 %v296
    %328 = vmatprep.subr.bf16.mxu0 0
    %329 = vmatpush2.bf16.msra.mxu0 0
    %330 = vmatprep.subr.bf16.mxu0 0
    %331 = vmatpush2.bf16.msra.mxu0 0
    %332 = vmatprep.subr.bf16.mxu0 0
    %333 = vmatpush2.bf16.msra.mxu0 0
    %334 = vmatprep.subr.bf16.mxu0 0
    %335 = vmatpush2.bf16.msra.mxu0 0
    %336 = vmatprep.subr.bf16.mxu0 0
    %337 = vmatpush2.bf16.msra.mxu0 0
    %338 = vmatprep.subr.bf16.mxu0 0
    %339 = vmatpush2.bf16.msra.mxu0 0
    %340 = vmatprep.subr.bf16.mxu0 0
    %341 = vmatpush2.bf16.msra.mxu0 0
    %342 = vmatprep.subr.bf16.mxu0 0
    %343 = vmatpush2.bf16.msra.mxu0 0
    %344 = vmatprep.mubr.bf16.mxu0 0
    %345 = vmatmul.mubr.bf16.gmra.mxu0 %v240
    %v346 = vpop.f32.mrf.mxu0
    %v347 = vadd.f32 %v262, %v346
    %v348 = vpop.f32.mrf.mxu0
    %v349 = vpop.f32.mrf.mxu0
    %v350 = vpop.f32.mrf.mxu0
    %351 = vdwg.mxu0
    %v352 = vxor.u32 %v347, 2147483648
    %v353 = vmul.f32 %v352, 1.442695
    %v354 = vpow.pop %v353
    %v355 = vadd.f32 %v354, 1.0
    %v356 = vrcp.pop %v355
    %v357 = vmul.f32 1.0, %v356
    %v358 = vpack.c.bf16 %v357, %v357
    %359 = vst [vmem:[%s5] sm:$0xf] %v358
    // Predicated region
    $region34: #{watermark_decoder.1} parent=1 // pred_check
      _
    $region35: #{watermark_decoder.1} parent=1 // pred_check_branch
      %361 = sbr.rel (0) target = $region37
    $region36: #{watermark_decoder.1} parent=1 // pred_region
      _
    $region37: #{watermark_decoder.1} parent=1 // pred_fallthru
      _
    // Predicated region
    $region38: #{watermark_decoder.1} parent=1 // pred_check
      _
    $region39: #{watermark_decoder.1} parent=1 // pred_check_branch
      %363 = sbr.rel (0) target = $region41
    $region40: #{watermark_decoder.1} parent=1 // pred_region
      _
    $region41: #{watermark_decoder.1} parent=1 // pred_fallthru
      _
    %364 = vsyncpa [#allocation3], 1
    %365 = vsyncpa [#allocation5], 1

</llo_original>
